<compile_context>
chip_gen: v7x
topology: tpu7x:2x2x1
jax: 0.10.0
libtpu: 0.0.40
codegen_flags: <defaults>
</compile_context>

<pallas_src>
import jax
import jax.numpy as jnp
from jax.experimental import pallas as pl
from jax.experimental.pallas import tpu as pltpu

INPUT_DIM = 784
HIDDEN_DIM = 256
OUTPUT_DIM = 10


def _round_up(v, m):
    return ((v + m - 1) // m) * m


def _mlp_kernel(x_ref, w1_ref, b1_ref, w2_ref, b2_ref, o_ref):
    # x arrives as f32 (single HBM read of the input); cast to bf16 in-VMEM
    # immediately before the MXU matmul. f32 accumulation on both matmuls.
    xb = x_ref[...].astype(jnp.bfloat16)
    h = jnp.dot(xb, w1_ref[...], preferred_element_type=jnp.float32)
    h = jnp.maximum(h + b1_ref[...], 0.0)                       # bias + ReLU in f32
    out = jnp.dot(h.astype(jnp.bfloat16), w2_ref[...],
                  preferred_element_type=jnp.float32)
    o_ref[...] = (out + b2_ref[...]).astype(o_ref.dtype)        # (bm, 10) store


def prepare_params(w1, b1, w2, b2):
    """One-time weight preparation, hoisted out of the per-call path."""
    return (w1.astype(jnp.bfloat16),
            b1.reshape(1, HIDDEN_DIM).astype(jnp.float32),
            w2.astype(jnp.bfloat16),
            b2.reshape(1, OUTPUT_DIM).astype(jnp.float32))


def simple_mlp_forward(x, w1b, b1_2d, w2b, b2_2d, *, block_m=1024):
    """x: (..., 784) -> logits (N, 10), matching SimpleMLP.forward."""
    x2d = x.reshape(-1, INPUT_DIM)                 # x.view(-1, 784); stays f32
    n = x2d.shape[0]

    # Batch tile: multiple of 16, clamped for tiny batches so we don't process
    # mostly-masked rows.
    bm = min(_round_up(block_m, 16), _round_up(n, 16))
    # v7x: ensure >= 2 grid steps for non-trivial batches so both TensorCores
    # get work under dimension_semantics=("parallel",). No-op cost on v5e/v6e.
    if n >= 256:
        bm = min(bm, _round_up(-(-n // 2), 16))
    grid = (pl.cdiv(n, bm),)                       # last partial block is masked

    return pl.pallas_call(
        _mlp_kernel,
        out_shape=jax.ShapeDtypeStruct((n, OUTPUT_DIM), jnp.float32),
        grid_spec=pltpu.PrefetchScalarGridSpec(
            num_scalar_prefetch=0,
            grid=grid,
            in_specs=[
                # Tile only the batch dim of x; weights/biases are small
                # full-array blocks, resident across the grid.
                pl.BlockSpec((bm, INPUT_DIM), lambda i: (i, 0)),
                pl.BlockSpec((INPUT_DIM, HIDDEN_DIM), lambda i: (0, 0)),
                pl.BlockSpec((1, HIDDEN_DIM), lambda i: (0, 0)),
                pl.BlockSpec((HIDDEN_DIM, OUTPUT_DIM), lambda i: (0, 0)),
                pl.BlockSpec((1, OUTPUT_DIM), lambda i: (0, 0)),
            ],
            out_specs=pl.BlockSpec((bm, OUTPUT_DIM), lambda i: (i, 0)),
        ),
        compiler_params=pltpu.CompilerParams(
            dimension_semantics=("parallel",),     # batch axis shards across TCs on v7x
        ),
    )(x2d, w1b, b1_2d, w2b, b2_2d)


def init_params(key):
    """Deterministic init mirroring nn.Linear's U(-1/sqrt(fan_in), 1/sqrt(fan_in))."""
    k1, k2, k3, k4 = jax.random.split(key, 4)
    bound1 = 1.0 / jnp.sqrt(jnp.float32(INPUT_DIM))
    bound2 = 1.0 / jnp.sqrt(jnp.float32(HIDDEN_DIM))
    w1 = jax.random.uniform(k1, (INPUT_DIM, HIDDEN_DIM), jnp.float32,
                            minval=-bound1, maxval=bound1)
    b1 = jax.random.uniform(k2, (HIDDEN_DIM,), jnp.float32,
                            minval=-bound1, maxval=bound1)
    w2 = jax.random.uniform(k3, (HIDDEN_DIM, OUTPUT_DIM), jnp.float32,
                            minval=-bound2, maxval=bound2)
    b2 = jax.random.uniform(k4, (OUTPUT_DIM,), jnp.float32,
                            minval=-bound2, maxval=bound2)
    return w1, b1, w2, b2


if __name__ == "__main__":
    key = jax.random.PRNGKey(0)
    kx, kp = jax.random.split(key)

    # Small MNIST-like input: batch=2, NCHW (2, 1, 28, 28); forward flattens to (2, 784).
    x = jax.random.normal(kx, (2, 1, 28, 28), jnp.float32)
    w1, b1, w2, b2 = init_params(kp)

    # One-time weight prep outside the jitted per-call path.
    prepared = prepare_params(w1, b1, w2, b2)

    fwd = jax.jit(simple_mlp_forward)
    logits = fwd(x, *prepared)
    jax.block_until_ready(logits)

    # Pure-JAX f32 reference (looser tolerance: kernel matmuls run in bf16 with
    # f32 accumulation — intentional inference-precision tradeoff).
    x2d = x.reshape(-1, INPUT_DIM)
    ref = jnp.maximum(x2d @ w1 + b1, 0.0) @ w2 + b2
    assert logits.shape == (2, OUTPUT_DIM)
    assert jnp.allclose(logits, ref, atol=2e-2, rtol=2e-2), (
        jnp.max(jnp.abs(logits - ref)))

    print("KERNEL_OK")
</pallas_src>

<mosaic_0001>
module attributes {stable_mosaic.version = 11 : i64} {
  func.func @_mlp_kernel(%arg0: i32, %arg1: memref<16x784xf32, #tpu.memory_space<vmem>>, %arg2: memref<784x256xbf16, #tpu.memory_space<vmem>>, %arg3: memref<1x256xf32, #tpu.memory_space<vmem>>, %arg4: memref<256x10xbf16, #tpu.memory_space<vmem>>, %arg5: memref<1x10xf32, #tpu.memory_space<vmem>>, %arg6: memref<16x10xf32, #tpu.memory_space<vmem>>) attributes {dimension_semantics = [#tpu.dimension_semantics<parallel>], iteration_bounds = array<i64: 1>, scalar_prefetch = 0 : i64, scratch_operands = 0 : i64, tpu.core_type = #tpu.core_type<tc>, window_params = [{transform_indices = @transform_0, window_bounds = array<i64: 16, 784>}, {pipeline_mode = #tpu.pipeline_mode<synchronous>, transform_indices = @transform_1, window_bounds = array<i64: 784, 256>}, {pipeline_mode = #tpu.pipeline_mode<synchronous>, transform_indices = @transform_2, window_bounds = array<i64: 1, 256>}, {pipeline_mode = #tpu.pipeline_mode<synchronous>, transform_indices = @transform_3, window_bounds = array<i64: 256, 10>}, {pipeline_mode = #tpu.pipeline_mode<synchronous>, transform_indices = @transform_4, window_bounds = array<i64: 1, 10>}, {transform_indices = @transform_5, window_bounds = array<i64: 16, 10>}]} {
    %c0 = arith.constant 0 : index
    %c0_0 = arith.constant 0 : index
    %0 = vector.load %arg1[%c0, %c0_0] : memref<16x784xf32, #tpu.memory_space<vmem>>, vector<16x784xf32>
    %1 = arith.truncf %0 : vector<16x784xf32> to vector<16x784xbf16>
    %c0_1 = arith.constant 0 : index
    %c0_2 = arith.constant 0 : index
    %2 = vector.load %arg2[%c0_1, %c0_2] : memref<784x256xbf16, #tpu.memory_space<vmem>>, vector<784x256xbf16>
    %cst = arith.constant dense<0.000000e+00> : vector<16x256xf32>
    %3 = tpu.matmul %1, %2, %cst {dimension_numbers = #tpu.dot_dimension_numbers<[1], [0], [0], [1], [0, 0, 1, 1], [], []>} : vector<16x784xbf16>, vector<784x256xbf16>, vector<16x256xf32> -> vector<16x256xf32>
    %c0_3 = arith.constant 0 : index
    %c0_4 = arith.constant 0 : index
    %4 = vector.load %arg3[%c0_3, %c0_4] : memref<1x256xf32, #tpu.memory_space<vmem>>, vector<1x256xf32>
    %5 = vector.broadcast %4 : vector<1x256xf32> to vector<16x256xf32>
    %6 = arith.addf %3, %5 : vector<16x256xf32>
    %cst_5 = arith.constant 0.000000e+00 : f32
    %7 = vector.broadcast %cst_5 : f32 to vector<16x256xf32>
    %8 = arith.maximumf %6, %7 : vector<16x256xf32>
    %9 = arith.truncf %8 : vector<16x256xf32> to vector<16x256xbf16>
    %c0_6 = arith.constant 0 : index
    %c0_7 = arith.constant 0 : index
    %10 = vector.load %arg4[%c0_6, %c0_7] : memref<256x10xbf16, #tpu.memory_space<vmem>>, vector<256x10xbf16>
    %cst_8 = arith.constant dense<0.000000e+00> : vector<16x10xf32>
    %11 = tpu.matmul %9, %10, %cst_8 {dimension_numbers = #tpu.dot_dimension_numbers<[1], [0], [0], [1], [0, 0, 1, 1], [], []>} : vector<16x256xbf16>, vector<256x10xbf16>, vector<16x10xf32> -> vector<16x10xf32>
    %c0_9 = arith.constant 0 : index
    %c0_10 = arith.constant 0 : index
    %12 = vector.load %arg5[%c0_9, %c0_10] : memref<1x10xf32, #tpu.memory_space<vmem>>, vector<1x10xf32>
    %13 = vector.broadcast %12 : vector<1x10xf32> to vector<16x10xf32>
    %14 = arith.addf %11, %13 : vector<16x10xf32>
    %c0_11 = arith.constant 0 : index
    %c0_12 = arith.constant 0 : index
    %15 = vector.load %arg6[%c0_11, %c0_12] : memref<16x10xf32, #tpu.memory_space<vmem>>, vector<16x10xf32>
    tpu.vector_store %arg6[%c0_11, %c0_12], %14 {strides = array<i32>} : memref<16x10xf32, #tpu.memory_space<vmem>>, vector<16x10xf32>,
    return
  }
  func.func @transform_0(%arg0: i32) -> (i32, i32) {
    %c0_i32 = arith.constant 0 : i32
    %c0_i32_0 = arith.constant 0 : i32
    return %arg0, %c0_i32 : i32, i32
  }
  func.func @transform_1(%arg0: i32) -> (i32, i32) {
    %c0_i32 = arith.constant 0 : i32
    %c0_i32_0 = arith.constant 0 : i32
    %c0_i32_1 = arith.constant 0 : i32
    return %c0_i32, %c0_i32_0 : i32, i32
  }
  func.func @transform_2(%arg0: i32) -> (i32, i32) {
    %c0_i32 = arith.constant 0 : i32
    %c0_i32_0 = arith.constant 0 : i32
    %c0_i32_1 = arith.constant 0 : i32
    return %c0_i32, %c0_i32_0 : i32, i32
  }
  func.func @transform_3(%arg0: i32) -> (i32, i32) {
    %c0_i32 = arith.constant 0 : i32
    %c0_i32_0 = arith.constant 0 : i32
    %c0_i32_1 = arith.constant 0 : i32
    return %c0_i32, %c0_i32_0 : i32, i32
  }
  func.func @transform_4(%arg0: i32) -> (i32, i32) {
    %c0_i32 = arith.constant 0 : i32
    %c0_i32_0 = arith.constant 0 : i32
    %c0_i32_1 = arith.constant 0 : i32
    return %c0_i32, %c0_i32_0 : i32, i32
  }
  func.func @transform_5(%arg0: i32) -> (i32, i32) {
    %c0_i32 = arith.constant 0 : i32
    %c0_i32_0 = arith.constant 0 : i32
    return %arg0, %c0_i32 : i32, i32
  }
}

</mosaic_0001>

<llo_original>
// kernel: simple_mlp_forward.1
$region0: #{simple_mlp_forward.1}
  #allocation0 [shape = 'u32[]', space=smem, size = 0x4, offset = 0x4, fixed_abs, tag = 'smem constant byte address 0x4 - core index']
  #allocation1 [shape = 'u32[144,128]{1,0:T(1,128)}', space=vmem, size = 0x12000, scoped, tag = 'internal scratch']
  %s0 = inlined_call_operand.vmem [shape: f32[2,784], index: 0, kind: input, shape index: {}]
  %s1 = inlined_call_operand.hbm [shape: bf16[784,256], index: 1, kind: input, shape index: {}]
  %s2 = inlined_call_operand.vmem [shape: f32[1,256], index: 2, kind: input, shape index: {}]
  %s3 = inlined_call_operand.vmem [shape: bf16[256,10], index: 3, kind: input, shape index: {}]
  %s4 = inlined_call_operand.vmem [shape: f32[1,10], index: 4, kind: input, shape index: {}]
  %s5 = inlined_call_operand.hbm [shape: f32[2,10], index: 5, kind: output, shape index: {}]
  %s6 = sld [smem:[#allocation0]]
  $region34: #{simple_mlp_forward.1} parent=0
    _
  %s8 = ssub.s32 1, %s6
  %s9 = scalar_select 0, %s8, %s6
  $region1: #{simple_mlp_forward.1} parent=0
    #allocation2 [shape = 'u8[401408]{0}', space=vmem, size = 0x62000, scoped, tag = 'input window, operand 1, single buffered']
    #allocation3 [shape = 's32[1]{0}', space=sflag, size = 0x4, scoped, tag = 'scoped memory for simple_mlp_forward.1']
    #allocation4 [shape = 's32[1]{0}', space=sflag, size = 0x4, scoped, tag = 'scoped memory for simple_mlp_forward.1']
    #allocation5 [shape = 'u8[8192]{0}', space=vmem, size = 0x2000, scoped, tag = 'output window, operand 0, single buffered']
    %10 = vsyncpa [#allocation3], 0
    %11 = vsyncpa [#allocation4], 0
    // Predicated region
    $region2: #{simple_mlp_forward.1} parent=1 // pred_check
      _
    $region3: #{simple_mlp_forward.1} parent=1 // pred_check_branch
      %13 = sbr.rel (0) target = $region5
    $region4: #{simple_mlp_forward.1} parent=1 // pred_region
      _
    $region5: #{simple_mlp_forward.1} parent=1 // pred_fallthru
      _
    // Predicated region
    $region6: #{simple_mlp_forward.1} parent=1 // pred_check
      _
    $region7: #{simple_mlp_forward.1} parent=1 // pred_check_branch
      %15 = sbr.rel (0) target = $region9
    $region8: #{simple_mlp_forward.1} parent=1 // pred_region
      %s17 = ssub.s32 12544, 12544
      %18 = vsyncadd [#allocation3], %s17
      %s19 = sshll.u32 [#allocation2], 4
      %s20 = int_to_ptr.vmem [resolvable:$true] %s19
      %25 = dma.hbm_to_vmem [thread:$0]  %s1, 12544, %s20, [#allocation3], 128, 128, 8
    $region9: #{simple_mlp_forward.1} parent=1 // pred_fallthru
      _
    // Predicated region
    $region10: #{simple_mlp_forward.1} parent=1 // pred_check
      _
    $region11: #{simple_mlp_forward.1} parent=1 // pred_check_branch
      %27 = sbr.rel (0) target = $region13
    $region12: #{simple_mlp_forward.1} parent=1 // pred_region
      _
    $region13: #{simple_mlp_forward.1} parent=1 // pred_fallthru
      _
    // Predicated region
    $region14: #{simple_mlp_forward.1} parent=1 // pred_check
      _
    $region15: #{simple_mlp_forward.1} parent=1 // pred_check_branch
      %29 = sbr.rel (0) target = $region17
    $region16: #{simple_mlp_forward.1} parent=1 // pred_region
      _
    $region17: #{simple_mlp_forward.1} parent=1 // pred_fallthru
      _
    // Predicated region
    $region18: #{simple_mlp_forward.1} parent=1 // pred_check
      _
    $region19: #{simple_mlp_forward.1} parent=1 // pred_check_branch
      %31 = sbr.rel (0) target = $region21
    $region20: #{simple_mlp_forward.1} parent=1 // pred_region
      _
    $region21: #{simple_mlp_forward.1} parent=1 // pred_fallthru
      _
    // Predicated region
    $region22: #{simple_mlp_forward.1} parent=1 // pred_check
      _
    $region23: #{simple_mlp_forward.1} parent=1 // pred_check_branch
      %33 = sbr.rel (0) target = $region25
    $region24: #{simple_mlp_forward.1} parent=1 // pred_region
      %34 = dma.done [#allocation3], 12544
    $region25: #{simple_mlp_forward.1} parent=1 // pred_fallthru
      _
    %v36 = vld [vmem:[%s0] sm:$0xff]
    %v37 = vld [vmem:[%s0 + $0x8] sm:$0x3f]
    %v38 = vld [vmem:[%s0 + $0xe] sm:$0xff]
    %v39 = vld [vmem:[%s0 + $0x16] sm:$0x3f]
    %v40 = vld [vmem:[%s0 + $0x1c] sm:$0xff]
    %v41 = vld [vmem:[%s0 + $0x24] sm:$0x3f]
    %v42 = vld [vmem:[%s0 + $0x2a] sm:$0xff]
    %v43 = vld [vmem:[%s0 + $0x32] sm:$0x3f]
    %v44 = vld [vmem:[%s0 + $0x38] sm:$0xff]
    %v45 = vld [vmem:[%s0 + $0x40] sm:$0x3f]
    %v46 = vld [vmem:[%s0 + $0x46] sm:$0xff]
    %v47 = vld [vmem:[%s0 + $0x4e] sm:$0x3f]
    %v48 = vld [vmem:[%s0 + $0x54] sm:$0xff]
    %v49 = vld [vmem:[%s0 + $0x5c] sm:$0x3f]
    %v50 = vld [vmem:[%s0 + $0x62] sm:$0xff]
    %v51 = vld [vmem:[%s0 + $0x6a] sm:$0x3f]
    %v68 = vcombine.low %v36, %v38
    %v69 = vcombine.high %v36, %v38
    %v70 = vcombine.low %v40, %v42
    %v71 = vcombine.high %v40, %v42
    %v73 = vunpack.c.l.s4 1983009808
    %v74 = vunpack.c.0.s8 %v73
    %v75 = vlaneseq
    %v76 = vshrl.u32 %v75, 7
    %v77 = vsub.s32 %v74, %v76
    %v78 = vrot.slane %v68, %v77
    %v80 = vunpack.c.l.s4 1983009808
    %v81 = vunpack.c.0.s8 %v80
    %v82 = vlaneseq
    %v83 = vshrl.u32 %v82, 7
    %v84 = vsub.s32 %v81, %v83
    %v85 = vrot.slane %v69, %v84
    %v87 = vunpack.c.l.s4 1983009808
    %v88 = vunpack.c.0.s8 %v87
    %v89 = vlaneseq
    %v90 = vshrl.u32 %v89, 7
    %v91 = vsub.s32 %v88, %v90
    %v92 = vrot.slane %v70, %v91
    %v94 = vunpack.c.l.s4 1983009808
    %v95 = vunpack.c.0.s8 %v94
    %v96 = vlaneseq
    %v97 = vshrl.u32 %v96, 7
    %v98 = vsub.s32 %v95, %v97
    %v99 = vrot.slane %v71, %v98
    %v100 = vcombine.low %v78, %v92
    %v101 = vcombine.high %v78, %v92
    %v102 = vcombine.low %v85, %v99
    %v103 = vcombine.high %v85, %v99
    %v104 = vcombine.low %v37, %v39
    %v105 = vcombine.high %v37, %v39
    %v106 = vcombine.low %v41, %v43
    %v107 = vcombine.high %v41, %v43
    %v109 = vunpack.c.l.s4 1983009808
    %v110 = vunpack.c.0.s8 %v109
    %v111 = vlaneseq
    %v112 = vshrl.u32 %v111, 7
    %v113 = vsub.s32 %v110, %v112
    %v114 = vrot.slane %v104, %v113
    %v116 = vunpack.c.l.s4 1983009808
    %v117 = vunpack.c.0.s8 %v116
    %v118 = vlaneseq
    %v119 = vshrl.u32 %v118, 7
    %v120 = vsub.s32 %v117, %v119
    %v121 = vrot.slane %v105, %v120
    %v123 = vunpack.c.l.s4 1983009808
    %v124 = vunpack.c.0.s8 %v123
    %v125 = vlaneseq
    %v126 = vshrl.u32 %v125, 7
    %v127 = vsub.s32 %v124, %v126
    %v128 = vrot.slane %v106, %v127
    %v130 = vunpack.c.l.s4 1983009808
    %v131 = vunpack.c.0.s8 %v130
    %v132 = vlaneseq
    %v133 = vshrl.u32 %v132, 7
    %v134 = vsub.s32 %v131, %v133
    %v135 = vrot.slane %v107, %v134
    %v136 = vcombine.low %v114, %v128
    %v137 = vcombine.high %v114, %v128
    %v138 = vcombine.low %v121, %v135
    %v139 = vcombine.low %v44, %v46
    %v140 = vcombine.high %v44, %v46
    %v141 = vcombine.low %v48, %v50
    %v142 = vcombine.high %v48, %v50
    %v144 = vunpack.c.l.s4 1983009808
    %v145 = vunpack.c.0.s8 %v144
    %v146 = vlaneseq
    %v147 = vshrl.u32 %v146, 7
    %v148 = vsub.s32 %v145, %v147
    %v149 = vrot.slane %v139, %v148
    %v151 = vunpack.c.l.s4 1983009808
    %v152 = vunpack.c.0.s8 %v151
    %v153 = vlaneseq
    %v154 = vshrl.u32 %v153, 7
    %v155 = vsub.s32 %v152, %v154
    %v156 = vrot.slane %v140, %v155
    %v158 = vunpack.c.l.s4 1983009808
    %v159 = vunpack.c.0.s8 %v158
    %v160 = vlaneseq
    %v161 = vshrl.u32 %v160, 7
    %v162 = vsub.s32 %v159, %v161
    %v163 = vrot.slane %v141, %v162
    %v165 = vunpack.c.l.s4 1983009808
    %v166 = vunpack.c.0.s8 %v165
    %v167 = vlaneseq
    %v168 = vshrl.u32 %v167, 7
    %v169 = vsub.s32 %v166, %v168
    %v170 = vrot.slane %v142, %v169
    %v171 = vcombine.low %v149, %v163
    %v172 = vcombine.high %v149, %v163
    %v173 = vcombine.low %v156, %v170
    %v174 = vcombine.high %v156, %v170
    %v175 = vcombine.low %v45, %v47
    %v176 = vcombine.high %v45, %v47
    %v177 = vcombine.low %v49, %v51
    %v178 = vcombine.high %v49, %v51
    %v180 = vunpack.c.l.s4 1983009808
    %v181 = vunpack.c.0.s8 %v180
    %v182 = vlaneseq
    %v183 = vshrl.u32 %v182, 7
    %v184 = vsub.s32 %v181, %v183
    %v185 = vrot.slane %v175, %v184
    %v187 = vunpack.c.l.s4 1983009808
    %v188 = vunpack.c.0.s8 %v187
    %v189 = vlaneseq
    %v190 = vshrl.u32 %v189, 7
    %v191 = vsub.s32 %v188, %v190
    %v192 = vrot.slane %v176, %v191
    %v194 = vunpack.c.l.s4 1983009808
    %v195 = vunpack.c.0.s8 %v194
    %v196 = vlaneseq
    %v197 = vshrl.u32 %v196, 7
    %v198 = vsub.s32 %v195, %v197
    %v199 = vrot.slane %v177, %v198
    %v201 = vunpack.c.l.s4 1983009808
    %v202 = vunpack.c.0.s8 %v201
    %v203 = vlaneseq
    %v204 = vshrl.u32 %v203, 7
    %v205 = vsub.s32 %v202, %v204
    %v206 = vrot.slane %v178, %v205
    %v207 = vcombine.low %v185, %v199
    %v208 = vcombine.high %v185, %v199
    %v209 = vcombine.low %v192, %v206
    %v224 = vpack.c.bf16 %v171, %v100
    %v225 = vpack.c.bf16 %v172, %v101
    %v226 = vpack.c.bf16 %v173, %v102
    %v227 = vpack.c.bf16 %v174, %v103
    %v228 = vpack.c.bf16 %v207, %v136
    %v229 = vpack.c.bf16 %v208, %v137
    %v230 = vpack.c.bf16 %v209, %v138
    %v231 = vld [vmem:[#allocation2] sm:$0xff]
    %v232 = vld [vmem:[#allocation2 + $0x8] sm:$0xff]
    %v233 = vld [vmem:[#allocation2 + $0x10] sm:$0xff]
    %v234 = vld [vmem:[#allocation2 + $0x18] sm:$0xff]
    %v235 = vld [vmem:[#allocation2 + $0x20] sm:$0xff]
    %v236 = vld [vmem:[#allocation2 + $0x28] sm:$0xff]
    %v237 = vld [vmem:[#allocation2 + $0x30] sm:$0xff]
    %v238 = vld [vmem:[#allocation2 + $0x38] sm:$0xff]
    %v239 = vld [vmem:[#allocation2 + $0x40] sm:$0xff]
    %v240 = vld [vmem:[#allocation2 + $0x48] sm:$0xff]
    %v241 = vld [vmem:[#allocation2 + $0x50] sm:$0xff]
    %v242 = vld [vmem:[#allocation2 + $0x58] sm:$0xff]
    %v243 = vld [vmem:[#allocation2 + $0x60] sm:$0xff]
    %v244 = vld [vmem:[#allocation2 + $0x68] sm:$0xff]
    %v245 = vld [vmem:[#allocation2 + $0x70] sm:$0xff]
    %v246 = vld [vmem:[#allocation2 + $0x78] sm:$0xff]
    %v247 = vld [vmem:[#allocation2 + $0x80] sm:$0xff]
    %v248 = vld [vmem:[#allocation2 + $0x88] sm:$0xff]
    %v249 = vld [vmem:[#allocation2 + $0x90] sm:$0xff]
    %v250 = vld [vmem:[#allocation2 + $0x98] sm:$0xff]
    %v251 = vld [vmem:[#allocation2 + $0xa0] sm:$0xff]
    %v252 = vld [vmem:[#allocation2 + $0xa8] sm:$0xff]
    %v253 = vld [vmem:[#allocation2 + $0xb0] sm:$0xff]
    %v254 = vld [vmem:[#allocation2 + $0xb8] sm:$0xff]
    %v255 = vld [vmem:[#allocation2 + $0xc0] sm:$0xff]
    %v256 = vld [vmem:[#allocation2 + $0xc8] sm:$0xff]
    %v257 = vld [vmem:[#allocation2 + $0xd0] sm:$0xff]
    %v258 = vld [vmem:[#allocation2 + $0xd8] sm:$0xff]
    %v259 = vld [vmem:[#allocation2 + $0xe0] sm:$0xff]
    %v260 = vld [vmem:[#allocation2 + $0xe8] sm:$0xff]
    %v261 = vld [vmem:[#allocation2 + $0xf0] sm:$0xff]
    %v262 = vld [vmem:[#allocation2 + $0xf8] sm:$0xff]
    %v263 = vld [vmem:[#allocation2 + $0x100] sm:$0xff]
    %v264 = vld [vmem:[#allocation2 + $0x108] sm:$0xff]
    %v265 = vld [vmem:[#allocation2 + $0x110] sm:$0xff]
    %v266 = vld [vmem:[#allocation2 + $0x118] sm:$0xff]
    %v267 = vld [vmem:[#allocation2 + $0x120] sm:$0xff]
    %v268 = vld [vmem:[#allocation2 + $0x128] sm:$0xff]
    %v269 = vld [vmem:[#allocation2 + $0x130] sm:$0xff]
    %v270 = vld [vmem:[#allocation2 + $0x138] sm:$0xff]
    %v271 = vld [vmem:[#allocation2 + $0x140] sm:$0xff]
    %v272 = vld [vmem:[#allocation2 + $0x148] sm:$0xff]
    %v273 = vld [vmem:[#allocation2 + $0x150] sm:$0xff]
    %v274 = vld [vmem:[#allocation2 + $0x158] sm:$0xff]
    %v275 = vld [vmem:[#allocation2 + $0x160] sm:$0xff]
    %v276 = vld [vmem:[#allocation2 + $0x168] sm:$0xff]
    %v277 = vld [vmem:[#allocation2 + $0x170] sm:$0xff]
    %v278 = vld [vmem:[#allocation2 + $0x178] sm:$0xff]
    %v279 = vld [vmem:[#allocation2 + $0x180] sm:$0xff]
    %v280 = vld [vmem:[#allocation2 + $0x188] sm:$0xff]
    %v281 = vld [vmem:[#allocation2 + $0x190] sm:$0xff]
    %v282 = vld [vmem:[#allocation2 + $0x198] sm:$0xff]
    %v283 = vld [vmem:[#allocation2 + $0x1a0] sm:$0xff]
    %v284 = vld [vmem:[#allocation2 + $0x1a8] sm:$0xff]
    %v285 = vld [vmem:[#allocation2 + $0x1b0] sm:$0xff]
    %v286 = vld [vmem:[#allocation2 + $0x1b8] sm:$0xff]
    %v287 = vld [vmem:[#allocation2 + $0x1c0] sm:$0xff]
    %v288 = vld [vmem:[#allocation2 + $0x1c8] sm:$0xff]
    %v289 = vld [vmem:[#allocation2 + $0x1d0] sm:$0xff]
    %v290 = vld [vmem:[#allocation2 + $0x1d8] sm:$0xff]
    %v291 = vld [vmem:[#allocation2 + $0x1e0] sm:$0xff]
    %v292 = vld [vmem:[#allocation2 + $0x1e8] sm:$0xff]
    %v293 = vld [vmem:[#allocation2 + $0x1f0] sm:$0xff]
    %v294 = vld [vmem:[#allocation2 + $0x1f8] sm:$0xff]
    %v295 = vld [vmem:[#allocation2 + $0x200] sm:$0xff]
    %v296 = vld [vmem:[#allocation2 + $0x208] sm:$0xff]
    %v297 = vld [vmem:[#allocation2 + $0x210] sm:$0xff]
    %v298 = vld [vmem:[#allocation2 + $0x218] sm:$0xff]
    %v299 = vld [vmem:[#allocation2 + $0x220] sm:$0xff]
    %v300 = vld [vmem:[#allocation2 + $0x228] sm:$0xff]
    %v301 = vld [vmem:[#allocation2 + $0x230] sm:$0xff]
    %v302 = vld [vmem:[#allocation2 + $0x238] sm:$0xff]
    %v303 = vld [vmem:[#allocation2 + $0x240] sm:$0xff]
    %v304 = vld [vmem:[#allocation2 + $0x248] sm:$0xff]
    %v305 = vld [vmem:[#allocation2 + $0x250] sm:$0xff]
    %v306 = vld [vmem:[#allocation2 + $0x258] sm:$0xff]
    %v307 = vld [vmem:[#allocation2 + $0x260] sm:$0xff]
    %v308 = vld [vmem:[#allocation2 + $0x268] sm:$0xff]
    %v309 = vld [vmem:[#allocation2 + $0x270] sm:$0xff]
    %v310 = vld [vmem:[#allocation2 + $0x278] sm:$0xff]
    %v311 = vld [vmem:[#allocation2 + $0x280] sm:$0xff]
    %v312 = vld [vmem:[#allocation2 + $0x288] sm:$0xff]
    %v313 = vld [vmem:[#allocation2 + $0x290] sm:$0xff]
    %v314 = vld [vmem:[#allocation2 + $0x298] sm:$0xff]
    %v315 = vld [vmem:[#allocation2 + $0x2a0] sm:$0xff]
    %v316 = vld [vmem:[#allocation2 + $0x2a8] sm:$0xff]
    %v317 = vld [vmem:[#allocation2 + $0x2b0] sm:$0xff]
    %v318 = vld [vmem:[#allocation2 + $0x2b8] sm:$0xff]
    %v319 = vld [vmem:[#allocation2 + $0x2c0] sm:$0xff]
    %v320 = vld [vmem:[#allocation2 + $0x2c8] sm:$0xff]
    %v321 = vld [vmem:[#allocation2 + $0x2d0] sm:$0xff]
    %v322 = vld [vmem:[#allocation2 + $0x2d8] sm:$0xff]
    %v323 = vld [vmem:[#allocation2 + $0x2e0] sm:$0xff]
    %v324 = vld [vmem:[#allocation2 + $0x2e8] sm:$0xff]
    %v325 = vld [vmem:[#allocation2 + $0x2f0] sm:$0xff]
    %v326 = vld [vmem:[#allocation2 + $0x2f8] sm:$0xff]
    %v327 = vld [vmem:[#allocation2 + $0x300] sm:$0xff]
    %v328 = vld [vmem:[#allocation2 + $0x308] sm:$0xff]
    %v329 = vld [vmem:[%s2] sm:$0x3]
    %v331 = vlaneseq
    %v332 = vshrl.u32 %v331, 7
    %v333 = vsub.s32 0, %v332
    %v334 = vrot.slane %v329, %v333
    %v335 = vlaneseq
    %v336 = vshrl.u32 %v335, 7
    %v337 = vsub.s32 1, %v336
    %v338 = vrot.slane %v329, %v337
    %v439 = vunpack.c.l.b16 %v231
    %v440 = vunpack.c.h.b16 %v231
    %v441 = vunpack.c.l.b16 %v232
    %v442 = vunpack.c.h.b16 %v232
    %v443 = vunpack.c.l.b16 %v233
    %v444 = vunpack.c.h.b16 %v233
    %v445 = vunpack.c.l.b16 %v234
    %v446 = vunpack.c.h.b16 %v234
    %v447 = vunpack.c.l.b16 %v235
    %v448 = vunpack.c.h.b16 %v235
    %v449 = vunpack.c.l.b16 %v236
    %v450 = vunpack.c.h.b16 %v236
    %v451 = vunpack.c.l.b16 %v237
    %v452 = vunpack.c.h.b16 %v237
    %v453 = vunpack.c.l.b16 %v238
    %v454 = vunpack.c.h.b16 %v238
    %v455 = vunpack.c.l.b16 %v239
    %v456 = vunpack.c.h.b16 %v239
    %v457 = vunpack.c.l.b16 %v240
    %v458 = vunpack.c.h.b16 %v240
    %v459 = vunpack.c.l.b16 %v241
    %v460 = vunpack.c.h.b16 %v241
    %v461 = vunpack.c.l.b16 %v242
    %v462 = vunpack.c.h.b16 %v242
    %v463 = vunpack.c.l.b16 %v243
    %v464 = vunpack.c.h.b16 %v243
    %v465 = vunpack.c.l.b16 %v244
    %v466 = vunpack.c.h.b16 %v244
    %v467 = vunpack.c.l.b16 %v245
    %v468 = vunpack.c.h.b16 %v245
    %v469 = vunpack.c.l.b16 %v246
    %v470 = vunpack.c.h.b16 %v246
    %v471 = vunpack.c.l.b16 %v247
    %v472 = vunpack.c.h.b16 %v247
    %v473 = vunpack.c.l.b16 %v248
    %v474 = vunpack.c.h.b16 %v248
    %v475 = vunpack.c.l.b16 %v249
    %v476 = vunpack.c.h.b16 %v249
    %v477 = vunpack.c.l.b16 %v250
    %v478 = vunpack.c.h.b16 %v250
    %v479 = vunpack.c.l.b16 %v251
    %v480 = vunpack.c.h.b16 %v251
    %v481 = vunpack.c.l.b16 %v252
    %v482 = vunpack.c.h.b16 %v252
    %v483 = vunpack.c.l.b16 %v253
    %v484 = vunpack.c.h.b16 %v253
    %v485 = vunpack.c.l.b16 %v254
    %v486 = vunpack.c.h.b16 %v254
    %v487 = vunpack.c.l.b16 %v255
    %v488 = vunpack.c.h.b16 %v255
    %v489 = vunpack.c.l.b16 %v256
    %v490 = vunpack.c.h.b16 %v256
    %v491 = vunpack.c.l.b16 %v257
    %v492 = vunpack.c.h.b16 %v257
    %v493 = vunpack.c.l.b16 %v258
    %v494 = vunpack.c.h.b16 %v258
    %v495 = vunpack.c.l.b16 %v259
    %v496 = vunpack.c.h.b16 %v259
    %v497 = vunpack.c.l.b16 %v260
    %v498 = vunpack.c.h.b16 %v260
    %v499 = vunpack.c.l.b16 %v261
    %v500 = vunpack.c.h.b16 %v261
    %v501 = vunpack.c.l.b16 %v262
    %v502 = vunpack.c.h.b16 %v262
    %v503 = vunpack.c.l.b16 %v263
    %v504 = vunpack.c.h.b16 %v263
    %v505 = vunpack.c.l.b16 %v264
    %v506 = vunpack.c.h.b16 %v264
    %v507 = vunpack.c.l.b16 %v265
    %v508 = vunpack.c.h.b16 %v265
    %v509 = vunpack.c.l.b16 %v266
    %v510 = vunpack.c.h.b16 %v266
    %v511 = vunpack.c.l.b16 %v267
    %v512 = vunpack.c.h.b16 %v267
    %v513 = vunpack.c.l.b16 %v268
    %v514 = vunpack.c.h.b16 %v268
    %v515 = vunpack.c.l.b16 %v269
    %v516 = vunpack.c.h.b16 %v269
    %v517 = vunpack.c.l.b16 %v270
    %v518 = vunpack.c.h.b16 %v270
    %v519 = vunpack.c.l.b16 %v271
    %v520 = vunpack.c.h.b16 %v271
    %v521 = vunpack.c.l.b16 %v272
    %v522 = vunpack.c.h.b16 %v272
    %v523 = vunpack.c.l.b16 %v273
    %v524 = vunpack.c.h.b16 %v273
    %v525 = vunpack.c.l.b16 %v274
    %v526 = vunpack.c.h.b16 %v274
    %v527 = vunpack.c.l.b16 %v275
    %v528 = vunpack.c.h.b16 %v275
    %v529 = vunpack.c.l.b16 %v276
    %v530 = vunpack.c.h.b16 %v276
    %v531 = vunpack.c.l.b16 %v277
    %v532 = vunpack.c.h.b16 %v277
    %v533 = vunpack.c.l.b16 %v278
    %v534 = vunpack.c.h.b16 %v278
    %v535 = vunpack.c.l.b16 %v279
    %v536 = vunpack.c.h.b16 %v279
    %v537 = vunpack.c.l.b16 %v280
    %v538 = vunpack.c.h.b16 %v280
    %v539 = vunpack.c.l.b16 %v281
    %v540 = vunpack.c.h.b16 %v281
    %v541 = vunpack.c.l.b16 %v282
    %v542 = vunpack.c.h.b16 %v282
    %v543 = vunpack.c.l.b16 %v283
    %v544 = vunpack.c.h.b16 %v283
    %v545 = vunpack.c.l.b16 %v284
    %v546 = vunpack.c.h.b16 %v284
    %v547 = vunpack.c.l.b16 %v285
    %v548 = vunpack.c.h.b16 %v285
    %v549 = vunpack.c.l.b16 %v286
    %v550 = vunpack.c.h.b16 %v286
    %v551 = vunpack.c.l.b16 %v287
    %v552 = vunpack.c.h.b16 %v287
    %v553 = vunpack.c.l.b16 %v288
    %v554 = vunpack.c.h.b16 %v288
    %v555 = vunpack.c.l.b16 %v289
    %v556 = vunpack.c.h.b16 %v289
    %v557 = vunpack.c.l.b16 %v290
    %v558 = vunpack.c.h.b16 %v290
    %v559 = vunpack.c.l.b16 %v291
    %v560 = vunpack.c.h.b16 %v291
    %v561 = vunpack.c.l.b16 %v292
    %v562 = vunpack.c.h.b16 %v292
    %v563 = vunpack.c.l.b16 %v293
    %v564 = vunpack.c.h.b16 %v293
    %v565 = vunpack.c.l.b16 %v294
    %v566 = vunpack.c.h.b16 %v294
    %v567 = vunpack.c.l.b16 %v295
    %v568 = vunpack.c.h.b16 %v295
    %v569 = vunpack.c.l.b16 %v296
    %v570 = vunpack.c.h.b16 %v296
    %v571 = vunpack.c.l.b16 %v297
    %v572 = vunpack.c.h.b16 %v297
    %v573 = vunpack.c.l.b16 %v298
    %v574 = vunpack.c.h.b16 %v298
    %v575 = vunpack.c.l.b16 %v299
    %v576 = vunpack.c.h.b16 %v299
    %v577 = vunpack.c.l.b16 %v300
    %v578 = vunpack.c.h.b16 %v300
    %v579 = vunpack.c.l.b16 %v301
    %v580 = vunpack.c.h.b16 %v301
    %v581 = vunpack.c.l.b16 %v302
    %v582 = vunpack.c.h.b16 %v302
    %v583 = vunpack.c.l.b16 %v303
    %v584 = vunpack.c.h.b16 %v303
    %v585 = vunpack.c.l.b16 %v304
    %v586 = vunpack.c.h.b16 %v304
    %v587 = vunpack.c.l.b16 %v305
    %v588 = vunpack.c.h.b16 %v305
    %v589 = vunpack.c.l.b16 %v306
    %v590 = vunpack.c.h.b16 %v306
    %v591 = vunpack.c.l.b16 %v307
    %v592 = vunpack.c.h.b16 %v307
    %v593 = vunpack.c.l.b16 %v308
    %v594 = vunpack.c.h.b16 %v308
    %v595 = vunpack.c.l.b16 %v309
    %v596 = vunpack.c.h.b16 %v309
    %v597 = vunpack.c.l.b16 %v310
    %v598 = vunpack.c.h.b16 %v310
    %v599 = vunpack.c.l.b16 %v311
    %v600 = vunpack.c.h.b16 %v311
    %v601 = vunpack.c.l.b16 %v312
    %v602 = vunpack.c.h.b16 %v312
    %v603 = vunpack.c.l.b16 %v313
    %v604 = vunpack.c.h.b16 %v313
    %v605 = vunpack.c.l.b16 %v314
    %v606 = vunpack.c.h.b16 %v314
    %v607 = vunpack.c.l.b16 %v315
    %v608 = vunpack.c.h.b16 %v315
    %v609 = vunpack.c.l.b16 %v316
    %v610 = vunpack.c.h.b16 %v316
    %v611 = vunpack.c.l.b16 %v317
    %v612 = vunpack.c.h.b16 %v317
    %v613 = vunpack.c.l.b16 %v318
    %v614 = vunpack.c.h.b16 %v318
    %v615 = vunpack.c.l.b16 %v319
    %v616 = vunpack.c.h.b16 %v319
    %v617 = vunpack.c.l.b16 %v320
    %v618 = vunpack.c.h.b16 %v320
    %v619 = vunpack.c.l.b16 %v321
    %v620 = vunpack.c.h.b16 %v321
    %v621 = vunpack.c.l.b16 %v322
    %v622 = vunpack.c.h.b16 %v322
    %v623 = vunpack.c.l.b16 %v323
    %v624 = vunpack.c.h.b16 %v323
    %v625 = vunpack.c.l.b16 %v324
    %v626 = vunpack.c.h.b16 %v324
    %v627 = vunpack.c.l.b16 %v325
    %v628 = vunpack.c.h.b16 %v325
    %v629 = vunpack.c.l.b16 %v326
    %v630 = vunpack.c.h.b16 %v326
    %v631 = vunpack.c.l.b16 %v327
    %v632 = vunpack.c.h.b16 %v327
    %v633 = vunpack.c.l.b16 %v328
    %v634 = vunpack.c.h.b16 %v328
    %v635 = vpack.c.b16 %v441, %v439
    %v636 = vpack.c.b16 %v442, %v440
    %v637 = vpack.c.b16 %v445, %v443
    %v638 = vpack.c.b16 %v446, %v444
    %v639 = vpack.c.b16 %v449, %v447
    %v640 = vpack.c.b16 %v450, %v448
    %v641 = vpack.c.b16 %v453, %v451
    %v642 = vpack.c.b16 %v454, %v452
    %v643 = vpack.c.b16 %v457, %v455
    %v644 = vpack.c.b16 %v458, %v456
    %v645 = vpack.c.b16 %v461, %v459
    %v646 = vpack.c.b16 %v462, %v460
    %v647 = vpack.c.b16 %v465, %v463
    %v648 = vpack.c.b16 %v466, %v464
    %v649 = vpack.c.b16 %v469, %v467
    %v650 = vpack.c.b16 %v470, %v468
    %v651 = vpack.c.b16 %v473, %v471
    %v652 = vpack.c.b16 %v474, %v472
    %v653 = vpack.c.b16 %v477, %v475
    %v654 = vpack.c.b16 %v478, %v476
    %v655 = vpack.c.b16 %v481, %v479
    %v656 = vpack.c.b16 %v482, %v480
    %v657 = vpack.c.b16 %v485, %v483
    %v658 = vpack.c.b16 %v486, %v484
    %v659 = vpack.c.b16 %v489, %v487
    %v660 = vpack.c.b16 %v490, %v488
    %v661 = vpack.c.b16 %v493, %v491
    %v662 = vpack.c.b16 %v494, %v492
    %v663 = vpack.c.b16 %v497, %v495
    %v664 = vpack.c.b16 %v498, %v496
    %v665 = vpack.c.b16 %v501, %v499
    %v666 = vpack.c.b16 %v502, %v500
    %v667 = vpack.c.b16 %v505, %v503
    %v668 = vpack.c.b16 %v506, %v504
    %v669 = vpack.c.b16 %v509, %v507
    %v670 = vpack.c.b16 %v510, %v508
    %v671 = vpack.c.b16 %v513, %v511
    %v672 = vpack.c.b16 %v514, %v512
    %v673 = vpack.c.b16 %v517, %v515
    %v674 = vpack.c.b16 %v518, %v516
    %v675 = vpack.c.b16 %v521, %v519
    %v676 = vpack.c.b16 %v522, %v520
    %v677 = vpack.c.b16 %v525, %v523
    %v678 = vpack.c.b16 %v526, %v524
    %v679 = vpack.c.b16 %v529, %v527
    %v680 = vpack.c.b16 %v530, %v528
    %v681 = vpack.c.b16 %v533, %v531
    %v682 = vpack.c.b16 %v534, %v532
    %v683 = vpack.c.b16 %v537, %v535
    %v684 = vpack.c.b16 %v538, %v536
    %v685 = vpack.c.b16 %v541, %v539
    %v686 = vpack.c.b16 %v542, %v540
    %v687 = vpack.c.b16 %v545, %v543
    %v688 = vpack.c.b16 %v546, %v544
    %v689 = vpack.c.b16 %v549, %v547
    %v690 = vpack.c.b16 %v550, %v548
    %v691 = vpack.c.b16 %v553, %v551
    %v692 = vpack.c.b16 %v554, %v552
    %v693 = vpack.c.b16 %v557, %v555
    %v694 = vpack.c.b16 %v558, %v556
    %v695 = vpack.c.b16 %v561, %v559
    %v696 = vpack.c.b16 %v562, %v560
    %v697 = vpack.c.b16 %v565, %v563
    %v698 = vpack.c.b16 %v566, %v564
    %v699 = vpack.c.b16 %v569, %v567
    %v700 = vpack.c.b16 %v570, %v568
    %v701 = vpack.c.b16 %v573, %v571
    %v702 = vpack.c.b16 %v574, %v572
    %v703 = vpack.c.b16 %v577, %v575
    %v704 = vpack.c.b16 %v578, %v576
    %v705 = vpack.c.b16 %v581, %v579
    %v706 = vpack.c.b16 %v582, %v580
    %v707 = vpack.c.b16 %v585, %v583
    %v708 = vpack.c.b16 %v586, %v584
    %v709 = vpack.c.b16 %v589, %v587
    %v710 = vpack.c.b16 %v590, %v588
    %v711 = vpack.c.b16 %v593, %v591
    %v712 = vpack.c.b16 %v594, %v592
    %v713 = vpack.c.b16 %v597, %v595
    %v714 = vpack.c.b16 %v598, %v596
    %v715 = vpack.c.b16 %v601, %v599
    %v716 = vpack.c.b16 %v602, %v600
    %v717 = vpack.c.b16 %v605, %v603
    %v718 = vpack.c.b16 %v606, %v604
    %v719 = vpack.c.b16 %v609, %v607
    %v720 = vpack.c.b16 %v610, %v608
    %v721 = vpack.c.b16 %v613, %v611
    %v722 = vpack.c.b16 %v614, %v612
    %v723 = vpack.c.b16 %v617, %v615
    %v724 = vpack.c.b16 %v618, %v616
    %v725 = vpack.c.b16 %v621, %v619
    %v726 = vpack.c.b16 %v622, %v620
    %v727 = vpack.c.b16 %v625, %v623
    %v728 = vpack.c.b16 %v626, %v624
    %v729 = vpack.c.b16 %v629, %v627
    %v730 = vpack.c.b16 %v630, %v628
    %v731 = vpack.c.b16 %v633, %v631
    %v732 = vpack.c.b16 %v634, %v632
    %vm831 = vcmask 130048
    %v833 = vsel %vm831, %v230, 0
    %835 = vmatprep.subr.bf16.mxu0 %v636
    %836 = vmatpush1.bf16.msra.mxu0 %v635
    %837 = vmatprep.subr.bf16.mxu0 %v638
    %838 = vmatpush1.bf16.msra.mxu0 %v637
    %839 = vmatprep.subr.bf16.mxu0 %v640
    %840 = vmatpush1.bf16.msra.mxu0 %v639
    %841 = vmatprep.subr.bf16.mxu0 %v642
    %842 = vmatpush1.bf16.msra.mxu0 %v641
    %843 = vmatprep.subr.bf16.mxu0 %v644
    %844 = vmatpush1.bf16.msra.mxu0 %v643
    %845 = vmatprep.subr.bf16.mxu0 %v646
    %846 = vmatpush1.bf16.msra.mxu0 %v645
    %847 = vmatprep.subr.bf16.mxu0 %v648
    %848 = vmatpush1.bf16.msra.mxu0 %v647
    %849 = vmatprep.subr.bf16.mxu0 %v650
    %850 = vmatpush1.bf16.msra.mxu0 %v649
    %851 = vmatprep.subr.bf16.mxu0 %v652
    %852 = vmatpush1.bf16.msra.mxu0 %v651
    %853 = vmatprep.subr.bf16.mxu0 %v654
    %854 = vmatpush1.bf16.msra.mxu0 %v653
    %855 = vmatprep.subr.bf16.mxu0 %v656
    %856 = vmatpush1.bf16.msra.mxu0 %v655
    %857 = vmatprep.subr.bf16.mxu0 %v658
    %858 = vmatpush1.bf16.msra.mxu0 %v657
    %859 = vmatprep.subr.bf16.mxu0 %v660
    %860 = vmatpush1.bf16.msra.mxu0 %v659
    %861 = vmatprep.subr.bf16.mxu0 %v662
    %862 = vmatpush1.bf16.msra.mxu0 %v661
    %863 = vmatprep.subr.bf16.mxu0 %v664
    %864 = vmatpush1.bf16.msra.mxu0 %v663
    %865 = vmatprep.subr.bf16.mxu0 %v666
    %866 = vmatpush1.bf16.msra.mxu0 %v665
    %867 = vmatprep.mubr.bf16.mxu0 %v225
    %868 = vmatmul.mubr.bf16.gmra.mrb[0].mxu0 %v224
    %v869 = vpop.f32.mrb[0].mxu0
    %v870 = vadd.f32 %v334, %v869
    %v871 = vpop.f32.mrb[0].mxu0
    %v872 = vadd.f32 %v338, %v871
    %v873 = vpop.f32.mrb[0].mxu0
    %v874 = vadd.f32 %v334, %v873
    %v875 = vpop.f32.mrb[0].mxu0
    %v876 = vadd.f32 %v338, %v875
    %877 = vdwg.mxu0
    %878 = vmatprep.subr.bf16.mxu0 %v668
    %879 = vmatpush1.bf16.msra.mxu0 %v667
    %880 = vmatprep.subr.bf16.mxu0 %v670
    %881 = vmatpush1.bf16.msra.mxu0 %v669
    %882 = vmatprep.subr.bf16.mxu0 %v672
    %883 = vmatpush1.bf16.msra.mxu0 %v671
    %884 = vmatprep.subr.bf16.mxu0 %v674
    %885 = vmatpush1.bf16.msra.mxu0 %v673
    %886 = vmatprep.subr.bf16.mxu0 %v676
    %887 = vmatpush1.bf16.msra.mxu0 %v675
    %888 = vmatprep.subr.bf16.mxu0 %v678
    %889 = vmatpush1.bf16.msra.mxu0 %v677
    %890 = vmatprep.subr.bf16.mxu0 %v680
    %891 = vmatpush1.bf16.msra.mxu0 %v679
    %892 = vmatprep.subr.bf16.mxu0 %v682
    %893 = vmatpush1.bf16.msra.mxu0 %v681
    %894 = vmatprep.subr.bf16.mxu0 %v684
    %895 = vmatpush1.bf16.msra.mxu0 %v683
    %896 = vmatprep.subr.bf16.mxu0 %v686
    %897 = vmatpush1.bf16.msra.mxu0 %v685
    %898 = vmatprep.subr.bf16.mxu0 %v688
    %899 = vmatpush1.bf16.msra.mxu0 %v687
    %900 = vmatprep.subr.bf16.mxu0 %v690
    %901 = vmatpush1.bf16.msra.mxu0 %v689
    %902 = vmatprep.subr.bf16.mxu0 %v692
    %903 = vmatpush1.bf16.msra.mxu0 %v691
    %904 = vmatprep.subr.bf16.mxu0 %v694
    %905 = vmatpush1.bf16.msra.mxu0 %v693
    %906 = vmatprep.subr.bf16.mxu0 %v696
    %907 = vmatpush1.bf16.msra.mxu0 %v695
    %908 = vmatprep.subr.bf16.mxu0 %v698
    %909 = vmatpush1.bf16.msra.mxu0 %v697
    %910 = vmatprep.mubr.bf16.mxu0 %v227
    %911 = vmatmul.mubr.bf16.gmra.mrb[0].mxu0 %v226
    %v912 = vpop.f32.mrb[0].mxu0
    %v913 = vadd.f32 %v870, %v912
    %v914 = vpop.f32.mrb[0].mxu0
    %v915 = vadd.f32 %v872, %v914
    %v916 = vpop.f32.mrb[0].mxu0
    %v917 = vadd.f32 %v874, %v916
    %v918 = vpop.f32.mrb[0].mxu0
    %v919 = vadd.f32 %v876, %v918
    %920 = vdwg.mxu0
    %921 = vmatprep.subr.bf16.mxu0 %v700
    %922 = vmatpush1.bf16.msra.mxu0 %v699
    %923 = vmatprep.subr.bf16.mxu0 %v702
    %924 = vmatpush1.bf16.msra.mxu0 %v701
    %925 = vmatprep.subr.bf16.mxu0 %v704
    %926 = vmatpush1.bf16.msra.mxu0 %v703
    %927 = vmatprep.subr.bf16.mxu0 %v706
    %928 = vmatpush1.bf16.msra.mxu0 %v705
    %929 = vmatprep.subr.bf16.mxu0 %v708
    %930 = vmatpush1.bf16.msra.mxu0 %v707
    %931 = vmatprep.subr.bf16.mxu0 %v710
    %932 = vmatpush1.bf16.msra.mxu0 %v709
    %933 = vmatprep.subr.bf16.mxu0 %v712
    %934 = vmatpush1.bf16.msra.mxu0 %v711
    %935 = vmatprep.subr.bf16.mxu0 %v714
    %936 = vmatpush1.bf16.msra.mxu0 %v713
    %937 = vmatprep.subr.bf16.mxu0 %v716
    %938 = vmatpush1.bf16.msra.mxu0 %v715
    %939 = vmatprep.subr.bf16.mxu0 %v718
    %940 = vmatpush1.bf16.msra.mxu0 %v717
    %941 = vmatprep.subr.bf16.mxu0 %v720
    %942 = vmatpush1.bf16.msra.mxu0 %v719
    %943 = vmatprep.subr.bf16.mxu0 %v722
    %944 = vmatpush1.bf16.msra.mxu0 %v721
    %945 = vmatprep.subr.bf16.mxu0 %v724
    %946 = vmatpush1.bf16.msra.mxu0 %v723
    %947 = vmatprep.subr.bf16.mxu0 %v726
    %948 = vmatpush1.bf16.msra.mxu0 %v725
    %949 = vmatprep.subr.bf16.mxu0 %v728
    %950 = vmatpush1.bf16.msra.mxu0 %v727
    %951 = vmatprep.subr.bf16.mxu0 %v730
    %952 = vmatpush1.bf16.msra.mxu0 %v729
    %953 = vmatprep.mubr.bf16.mxu0 %v229
    %954 = vmatmul.mubr.bf16.gmra.mrb[0].mxu0 %v228
    %v955 = vpop.f32.mrb[0].mxu0
    %v956 = vadd.f32 %v913, %v955
    %v957 = vpop.f32.mrb[0].mxu0
    %v958 = vadd.f32 %v915, %v957
    %v959 = vpop.f32.mrb[0].mxu0
    %v960 = vadd.f32 %v917, %v959
    %v961 = vpop.f32.mrb[0].mxu0
    %v962 = vadd.f32 %v919, %v961
    %963 = vdwg.mxu0
    %964 = vmatprep.subr.bf16.mxu0 %v732
    %965 = vmatpush1.bf16.msra.mxu0 %v731
    %966 = vmatprep.subr.bf16.mxu0 0
    %967 = vmatpush1.bf16.msra.mxu0 0
    %968 = vmatprep.subr.bf16.mxu0 0
    %969 = vmatpush1.bf16.msra.mxu0 0
    %970 = vmatprep.subr.bf16.mxu0 0
    %971 = vmatpush1.bf16.msra.mxu0 0
    %972 = vmatprep.subr.bf16.mxu0 0
    %973 = vmatpush1.bf16.msra.mxu0 0
    %974 = vmatprep.subr.bf16.mxu0 0
    %975 = vmatpush1.bf16.msra.mxu0 0
    %976 = vmatprep.subr.bf16.mxu0 0
    %977 = vmatpush1.bf16.msra.mxu0 0
    %978 = vmatprep.subr.bf16.mxu0 0
    %979 = vmatpush1.bf16.msra.mxu0 0
    %980 = vmatprep.subr.bf16.mxu0 0
    %981 = vmatpush1.bf16.msra.mxu0 0
    %982 = vmatprep.subr.bf16.mxu0 0
    %983 = vmatpush1.bf16.msra.mxu0 0
    %984 = vmatprep.subr.bf16.mxu0 0
    %985 = vmatpush1.bf16.msra.mxu0 0
    %986 = vmatprep.subr.bf16.mxu0 0
    %987 = vmatpush1.bf16.msra.mxu0 0
    %988 = vmatprep.subr.bf16.mxu0 0
    %989 = vmatpush1.bf16.msra.mxu0 0
    %990 = vmatprep.subr.bf16.mxu0 0
    %991 = vmatpush1.bf16.msra.mxu0 0
    %992 = vmatprep.subr.bf16.mxu0 0
    %993 = vmatpush1.bf16.msra.mxu0 0
    %994 = vmatprep.subr.bf16.mxu0 0
    %995 = vmatpush1.bf16.msra.mxu0 0
    %996 = vmatprep.mubr.bf16.mxu0 0
    %997 = vmatmul.mubr.bf16.gmra.mrb[0].mxu0 %v833
    %v998 = vpop.f32.mrb[0].mxu0
    %v999 = vadd.f32 %v956, %v998
    %v1000 = vpop.f32.mrb[0].mxu0
    %v1001 = vadd.f32 %v958, %v1000
    %v1002 = vpop.f32.mrb[0].mxu0
    %v1003 = vadd.f32 %v960, %v1002
    %v1004 = vpop.f32.mrb[0].mxu0
    %v1005 = vadd.f32 %v962, %v1004
    %1006 = vdwg.mxu0
    %v1007 = vmax.f32 %v999, 0.0
    %v1008 = vmax.f32 %v1001, 0.0
    %v1009 = vmax.f32 %v1003, 0.0
    %v1010 = vmax.f32 %v1005, 0.0
    %v1011 = vpack.c.bf16 %v1009, %v1007
    %v1012 = vpack.c.bf16 %v1010, %v1008
    %v1013 = vld [vmem:[%s3] sm:$0xf]
    %v1014 = vld [vmem:[%s3 + $0x4] sm:$0xf]
    %v1015 = vld [vmem:[%s3 + $0x8] sm:$0xf]
    %v1016 = vld [vmem:[%s3 + $0xc] sm:$0xf]
    %v1017 = vld [vmem:[%s3 + $0x10] sm:$0xf]
    %v1018 = vld [vmem:[%s3 + $0x14] sm:$0xf]
    %v1019 = vld [vmem:[%s3 + $0x18] sm:$0xf]
    %v1020 = vld [vmem:[%s3 + $0x1c] sm:$0xf]
    %v1021 = vld [vmem:[%s3 + $0x20] sm:$0xf]
    %v1022 = vld [vmem:[%s3 + $0x24] sm:$0xf]
    %v1023 = vld [vmem:[%s3 + $0x28] sm:$0xf]
    %v1024 = vld [vmem:[%s3 + $0x2c] sm:$0xf]
    %v1025 = vld [vmem:[%s3 + $0x30] sm:$0xf]
    %v1026 = vld [vmem:[%s3 + $0x34] sm:$0xf]
    %v1027 = vld [vmem:[%s3 + $0x38] sm:$0xf]
    %v1028 = vld [vmem:[%s3 + $0x3c] sm:$0xf]
    %v1029 = vld [vmem:[%s3 + $0x40] sm:$0xf]
    %v1030 = vld [vmem:[%s3 + $0x44] sm:$0xf]
    %v1031 = vld [vmem:[%s3 + $0x48] sm:$0xf]
    %v1032 = vld [vmem:[%s3 + $0x4c] sm:$0xf]
    %v1033 = vld [vmem:[%s3 + $0x50] sm:$0xf]
    %v1034 = vld [vmem:[%s3 + $0x54] sm:$0xf]
    %v1035 = vld [vmem:[%s3 + $0x58] sm:$0xf]
    %v1036 = vld [vmem:[%s3 + $0x5c] sm:$0xf]
    %v1037 = vld [vmem:[%s3 + $0x60] sm:$0xf]
    %v1038 = vld [vmem:[%s3 + $0x64] sm:$0xf]
    %v1039 = vld [vmem:[%s3 + $0x68] sm:$0xf]
    %v1040 = vld [vmem:[%s3 + $0x6c] sm:$0xf]
    %v1041 = vld [vmem:[%s3 + $0x70] sm:$0xf]
    %v1042 = vld [vmem:[%s3 + $0x74] sm:$0xf]
    %v1043 = vld [vmem:[%s3 + $0x78] sm:$0xf]
    %v1044 = vld [vmem:[%s3 + $0x7c] sm:$0xf]
    %v1045 = vld [vmem:[%s4] sm:$0x1]
    %v1047 = vlaneseq
    %v1048 = vshrl.u32 %v1047, 7
    %v1049 = vsub.s32 0, %v1048
    %v1050 = vrot.slane %v1045, %v1049
    %v1084 = vunpack.c.l.b16 %v1013
    %v1085 = vunpack.c.l.b16 %v1014
    %v1086 = vunpack.c.l.b16 %v1015
    %v1087 = vunpack.c.l.b16 %v1016
    %v1088 = vunpack.c.l.b16 %v1017
    %v1089 = vunpack.c.l.b16 %v1018
    %v1090 = vunpack.c.l.b16 %v1019
    %v1091 = vunpack.c.l.b16 %v1020
    %v1092 = vunpack.c.l.b16 %v1021
    %v1093 = vunpack.c.l.b16 %v1022
    %v1094 = vunpack.c.l.b16 %v1023
    %v1095 = vunpack.c.l.b16 %v1024
    %v1096 = vunpack.c.l.b16 %v1025
    %v1097 = vunpack.c.l.b16 %v1026
    %v1098 = vunpack.c.l.b16 %v1027
    %v1099 = vunpack.c.l.b16 %v1028
    %v1100 = vunpack.c.l.b16 %v1029
    %v1101 = vunpack.c.l.b16 %v1030
    %v1102 = vunpack.c.l.b16 %v1031
    %v1103 = vunpack.c.l.b16 %v1032
    %v1104 = vunpack.c.l.b16 %v1033
    %v1105 = vunpack.c.l.b16 %v1034
    %v1106 = vunpack.c.l.b16 %v1035
    %v1107 = vunpack.c.l.b16 %v1036
    %v1108 = vunpack.c.l.b16 %v1037
    %v1109 = vunpack.c.l.b16 %v1038
    %v1110 = vunpack.c.l.b16 %v1039
    %v1111 = vunpack.c.l.b16 %v1040
    %v1112 = vunpack.c.l.b16 %v1041
    %v1113 = vunpack.c.l.b16 %v1042
    %v1114 = vunpack.c.l.b16 %v1043
    %v1115 = vunpack.c.l.b16 %v1044
    %v1116 = vpack.c.b16 %v1085, %v1084
    %v1117 = vpack.c.b16 %v1087, %v1086
    %v1118 = vpack.c.b16 %v1089, %v1088
    %v1119 = vpack.c.b16 %v1091, %v1090
    %v1120 = vpack.c.b16 %v1093, %v1092
    %v1121 = vpack.c.b16 %v1095, %v1094
    %v1122 = vpack.c.b16 %v1097, %v1096
    %v1123 = vpack.c.b16 %v1099, %v1098
    %v1124 = vpack.c.b16 %v1101, %v1100
    %v1125 = vpack.c.b16 %v1103, %v1102
    %v1126 = vpack.c.b16 %v1105, %v1104
    %v1127 = vpack.c.b16 %v1107, %v1106
    %v1128 = vpack.c.b16 %v1109, %v1108
    %v1129 = vpack.c.b16 %v1111, %v1110
    %v1130 = vpack.c.b16 %v1113, %v1112
    %v1131 = vpack.c.b16 %v1115, %v1114
    %1148 = vmatprep.subr.bf16.mxu0 0
    %1149 = vmatpush1.bf16.msra.mxu0 %v1116
    %1150 = vmatprep.subr.bf16.mxu0 0
    %1151 = vmatpush1.bf16.msra.mxu0 %v1117
    %1152 = vmatprep.subr.bf16.mxu0 0
    %1153 = vmatpush1.bf16.msra.mxu0 %v1118
    %1154 = vmatprep.subr.bf16.mxu0 0
    %1155 = vmatpush1.bf16.msra.mxu0 %v1119
    %1156 = vmatprep.subr.bf16.mxu0 0
    %1157 = vmatpush1.bf16.msra.mxu0 %v1120
    %1158 = vmatprep.subr.bf16.mxu0 0
    %1159 = vmatpush1.bf16.msra.mxu0 %v1121
    %1160 = vmatprep.subr.bf16.mxu0 0
    %1161 = vmatpush1.bf16.msra.mxu0 %v1122
    %1162 = vmatprep.subr.bf16.mxu0 0
    %1163 = vmatpush1.bf16.msra.mxu0 %v1123
    %1164 = vmatprep.subr.bf16.mxu0 0
    %1165 = vmatpush1.bf16.msra.mxu0 %v1124
    %1166 = vmatprep.subr.bf16.mxu0 0
    %1167 = vmatpush1.bf16.msra.mxu0 %v1125
    %1168 = vmatprep.subr.bf16.mxu0 0
    %1169 = vmatpush1.bf16.msra.mxu0 %v1126
    %1170 = vmatprep.subr.bf16.mxu0 0
    %1171 = vmatpush1.bf16.msra.mxu0 %v1127
    %1172 = vmatprep.subr.bf16.mxu0 0
    %1173 = vmatpush1.bf16.msra.mxu0 %v1128
    %1174 = vmatprep.subr.bf16.mxu0 0
    %1175 = vmatpush1.bf16.msra.mxu0 %v1129
    %1176 = vmatprep.subr.bf16.mxu0 0
    %1177 = vmatpush1.bf16.msra.mxu0 %v1130
    %1178 = vmatprep.subr.bf16.mxu0 0
    %1179 = vmatpush1.bf16.msra.mxu0 %v1131
    %1180 = vmatprep.mubr.bf16.mxu0 %v1012
    %1181 = vmatmul.mubr.bf16.gmra.mrb[0].mxu0 %v1011
    %v1182 = vpop.f32.mrb[0].mxu0
    %v1183 = vadd.f32 %v1050, %v1182
    %v1184 = vpop.f32.mrb[0].mxu0
    %v1185 = vpop.f32.mrb[0].mxu0
    %v1186 = vadd.f32 %v1050, %v1185
    %v1187 = vpop.f32.mrb[0].mxu0
    %1188 = vdwg.mxu0
    %vm1189 = vcmask 80896
    %1190 = vst.msk [vmem:[#allocation5] sm:$0xff] %vm1189, %v1183
    %1191 = vst.msk [vmem:[#allocation5 + $0x8] sm:$0xff] %vm1189, %v1186
    // Predicated region
    $region26: #{simple_mlp_forward.1} parent=1 // pred_check
      _
    $region27: #{simple_mlp_forward.1} parent=1 // pred_check_branch
      %1193 = sbr.rel (0) target = $region29
    $region28: #{simple_mlp_forward.1} parent=1 // pred_region
      %s1195 = ssub.s32 256, 32
      %1196 = vsyncadd [#allocation4], %s1195
      %s1197 = sshll.u32 [#allocation5], 4
      %s1198 = int_to_ptr.vmem [resolvable:$true] %s1197
      %1203 = dma.vmem_to_hbm [thread:$0]  %s1198, 32, %s5, [#allocation4], 32, 32, 2
    $region29: #{simple_mlp_forward.1} parent=1 // pred_fallthru
      _
    // Predicated region
    $region30: #{simple_mlp_forward.1} parent=1 // pred_check
      _
    $region31: #{simple_mlp_forward.1} parent=1 // pred_check_branch
      %1205 = sbr.rel (0) target = $region33
    $region32: #{simple_mlp_forward.1} parent=1 // pred_region
      %1206 = dma.done [#allocation4], 256
    $region33: #{simple_mlp_forward.1} parent=1 // pred_fallthru
      _
    %1207 = vsyncpa [#allocation3], 1
    %1208 = vsyncpa [#allocation4], 1

</llo_original>
